<compile_context>
chip_gen: v6e
topology: v6e:2x2x1
jax: 0.10.0
libtpu: 0.0.40
codegen_flags: <defaults>
</compile_context>

<pallas_src>
import functools

import numpy as np
import jax
import jax.numpy as jnp
from jax.experimental import pallas as pl
from jax.experimental.pallas import tpu as pltpu

NUM_STATES = 10
FEATURE_DIM = 128          # module default is 512; small demo size, lane-aligned
HIDDEN1 = FEATURE_DIM // 2
HIDDEN2 = FEATURE_DIM // 4
DECAY = 0.9
UPDATE_INTERVAL = 10

S_PAD = 16                 # num_states padded to a sublane multiple
LANE = 128                 # lane-dense output slab width


# ---------------------------------------------------------------------------
# Fused kernel (update steps only): current_matrix + projector MLP + EMA update
# ---------------------------------------------------------------------------
def _fused_kernel(df_ref, ids_ref, feat_ref, w1_ref, w2_ref, bias_ref,
                  newdf_ref, slab_ref, *, num_states, decay):
    sp = df_ref.shape[0]                                     # S_PAD (16)
    d = df_ref[...]                                          # (16, 16) f32

    rr = jax.lax.broadcasted_iota(jnp.int32, (sp, sp), 0)
    cc = jax.lax.broadcasted_iota(jnp.int32, (sp, sp), 1)
    diag = rr == cc
    eye_f = diag.astype(jnp.float32)

    # d^T via identity matmul (contract-last-dims): dt[a,b] = sum_k I[a,k] d[b,k]
    # = d[b,a].  Same dimension_numbers as the similarity matmul below, which
    # is known to lower on Mosaic; avoids relying on 16-lane jnp.transpose.
    dt = jax.lax.dot_general(eye_f, d, (((1,), (1,)), ((), ())),
                             preferred_element_type=jnp.float32)
    cur = jnp.where(diag, jnp.float32(1.0), (d + dt) * 0.5)  # (16, 16)

    # --- state_projector MLP (bf16 operands, f32 MXU accumulation) ----------
    x = feat_ref[...]                                        # (B, F) f32
    bias = bias_ref[...]                                     # (1, 128) f32 slab
    b1 = bias[:, :HIDDEN1]                                   # (1, 64)
    b2 = bias[:, HIDDEN1:HIDDEN1 + HIDDEN2]                  # (1, 32)
    h = jnp.dot(x.astype(jnp.bfloat16), w1_ref[...],
                preferred_element_type=jnp.float32) + b1
    h = jnp.maximum(h, 0.0)
    proj = jnp.dot(h.astype(jnp.bfloat16), w2_ref[...],
                   preferred_element_type=jnp.float32) + b2  # (B, 32)

    # --- per-state centroids -> cosine distance (kept in f32) ---------------
    ids = ids_ref[...]                                       # (1, B) int32
    b = ids.shape[1]
    onehot = (jax.lax.broadcasted_iota(jnp.int32, (sp, b), 0)
              == ids).astype(jnp.float32)                    # (16, B)
    counts = jnp.sum(onehot, axis=1, keepdims=True)          # (16, 1)
    # row-layout counts via one tiny matmul (replaces onehot_t / ids_col input)
    counts_row = jax.lax.dot_general(jnp.ones((1, b), jnp.float32), onehot,
                                     (((1,), (1,)), ((), ())),
                                     preferred_element_type=jnp.float32)  # (1,16)

    sums = jnp.dot(onehot, x, preferred_element_type=jnp.float32)   # (16, F)
    centers = sums * (1.0 / jnp.maximum(counts, 1.0))        # masked per-state mean
    sumsq = jnp.sum(centers * centers, axis=1, keepdims=True)
    centers_n = centers * jax.lax.rsqrt(jnp.maximum(sumsq, 1e-24))  # F.normalize
    sim = jax.lax.dot_general(centers_n, centers_n, (((1,), (1,)), ((), ())),
                              preferred_element_type=jnp.float32)   # (16, 16)
    dist = 2.0 - sim

    sid_col = jax.lax.broadcasted_iota(jnp.int32, (sp, 1), 0)
    sid_row = jax.lax.broadcasted_iota(jnp.int32, (1, sp), 1)
    present_col = (counts > 0.0) & (sid_col >= 1) & (sid_col < num_states)
    present_row = (counts_row > 0.0) & (sid_row >= 1) & (sid_row < num_states)
    mask = present_col & present_row & jnp.logical_not(diag)

    # Reference visits each unordered pair twice -> folded double EMA:
    #   t2 = decay^2 * old + (1 - decay^2) * dist   (single store, v5e-friendly)
    decay2 = decay * decay
    newdf_ref[...] = jnp.where(mask, decay2 * d + (1.0 - decay2) * dist, d)

    # One (16,128) output slab: lanes [0:16] = current_matrix, rows [0:B] of
    # lanes [16:48] = projector output.  Built with static-slice stores (not a
    # lane concatenate) to keep lowering risk at zero; still a single output
    # writeback DMA.
    slab_ref[...] = jnp.zeros(slab_ref.shape, slab_ref.dtype)
    slab_ref[:, 0:sp] = cur
    slab_ref[0:proj.shape[0], sp:sp + proj.shape[1]] = proj


# ---------------------------------------------------------------------------
# Parameter construction (persistent padded / lane-dense layouts)
# ---------------------------------------------------------------------------
def make_params(init_df, w1_t, b1, w2_t, b2):
    S = init_df.shape[0]
    df_pad = jnp.zeros((S_PAD, S_PAD), jnp.float32).at[:S, :S].set(
        jnp.asarray(init_df, jnp.float32))
    bias = (jnp.zeros((1, LANE), jnp.float32)
            .at[:, :HIDDEN1].set(jnp.asarray(b1, jnp.float32).reshape(1, -1))
            .at[:, HIDDEN1:HIDDEN1 + HIDDEN2].set(
                jnp.asarray(b2, jnp.float32).reshape(1, -1)))
    return {
        "num_states": int(S),
        "distance_factors": df_pad,                 # persistent padded layout
        "w1_t": jnp.asarray(w1_t, jnp.bfloat16),    # bf16 MXU operands
        "w2_t": jnp.asarray(w2_t, jnp.bfloat16),
        "bias": bias,                               # (1,128) lane-dense bias slab
    }


# ---------------------------------------------------------------------------
# Forward wrapper
# ---------------------------------------------------------------------------
def adaptive_state_distance_forward(params, state_features, state_ids,
                                    is_training=True, update_counter=0,
                                    update_interval=UPDATE_INTERVAL,
                                    decay=DECAY):
    df_pad = params["distance_factors"]             # (S_PAD, S_PAD) f32
    num_states = params["num_states"]

    do_update = bool(is_training) and (update_counter % update_interval == 0)

    if not do_update:
        # Common path: ~2 vregs of VPU work -> plain jnp, no kernel launch.
        sym = (df_pad + df_pad.T) * 0.5
        cur_pad = jnp.where(jnp.eye(S_PAD, dtype=bool), jnp.float32(1.0), sym)
        return cur_pad, df_pad, None

    B, _ = state_features.shape
    ids_row = state_ids.astype(jnp.int32).reshape(1, B)

    vmem = pl.BlockSpec(memory_space=pltpu.MemorySpace.VMEM)
    newdf_pad, slab = pl.pallas_call(
        functools.partial(_fused_kernel, num_states=num_states, decay=decay),
        out_shape=(jax.ShapeDtypeStruct((S_PAD, S_PAD), jnp.float32),
                   jax.ShapeDtypeStruct((S_PAD, LANE), jnp.float32)),
        in_specs=[vmem] * 6,
        out_specs=(vmem, vmem),
        input_output_aliases={0: 0},   # updated factors reuse the param buffer
    )(df_pad, ids_row, state_features,
      params["w1_t"], params["w2_t"], params["bias"])

    cur_pad = slab[:, :S_PAD]
    proj = slab[:B, S_PAD:S_PAD + HIDDEN2]
    # TODO(synk): update_history bookkeeping (host-side .item() comparisons) is
    # Python control logic, not kernel work; not reproduced here.
    # TODO(synk): at production sizes (F=512, large B) add a "parallel" grid
    # axis over the batch for v7x's two TensorCores; pointless at demo size.
    return cur_pad, newdf_pad, proj


# ---------------------------------------------------------------------------
# Plain-numpy reference (mirrors the PyTorch loop, incl. double EMA per pair)
# ---------------------------------------------------------------------------
def _reference(df, feats, ids, decay, num_states):
    df = np.asarray(df, np.float32).copy()
    cur = (df + df.T) / 2.0
    eye = np.eye(num_states, dtype=np.float32)
    cur = cur * (1.0 - eye) + eye
    centers = {}
    for s in range(1, num_states):
        m = ids == s
        if m.sum() > 0:
            centers[s] = feats[m].mean(0)
    newdf = df.copy()
    if len(centers) > 1:
        keys = sorted(centers)
        C = np.stack([centers[s] for s in keys]).astype(np.float32)
        Cn = C / np.maximum(np.linalg.norm(C, axis=1, keepdims=True), 1e-12)
        D = 2.0 - Cn @ Cn.T
        for i, si in enumerate(keys):
            for j, sj in enumerate(keys):
                if i != j:
                    old = newdf[si, sj]
                    new = decay * old + (1.0 - decay) * D[i, j]
                    newdf[si, sj] = new
                    newdf[sj, si] = new
    return cur, newdf


if __name__ == "__main__":
    key = jax.random.PRNGKey(0)
    k_feat, k_ids, k_w1, k_b1, k_w2, k_b2 = jax.random.split(key, 6)

    # deterministic parameter init (mirrors init_with_prior=True)
    init_df = np.ones((NUM_STATES, NUM_STATES), np.float32)
    init_df[1, 4] = init_df[4, 1] = 2.0
    init_df[3, 4] = init_df[4, 3] = 0.7
    init_df[1, 2] = init_df[2, 1] = 1.5
    init_df[0, :] = 1.8
    init_df[:, 0] = 1.8
    init_df[0, 0] = 1.0

    bound1 = 1.0 / np.sqrt(FEATURE_DIM)
    bound2 = 1.0 / np.sqrt(HIDDEN1)
    w1_t = jax.random.uniform(k_w1, (FEATURE_DIM, HIDDEN1), jnp.float32, -bound1, bound1)
    b1 = jax.random.uniform(k_b1, (1, HIDDEN1), jnp.float32, -bound1, bound1)
    w2_t = jax.random.uniform(k_w2, (HIDDEN1, HIDDEN2), jnp.float32, -bound2, bound2)
    b2 = jax.random.uniform(k_b2, (1, HIDDEN2), jnp.float32, -bound2, bound2)

    params = make_params(init_df, w1_t, b1, w2_t, b2)

    B = 8
    state_features = jax.random.normal(k_feat, (B, FEATURE_DIM), jnp.float32)
    state_ids = jax.random.randint(k_ids, (B,), 0, NUM_STATES, jnp.int32)

    S = NUM_STATES
    cur_ref, newdf_ref = _reference(init_df, np.asarray(state_features),
                                    np.asarray(state_ids), DECAY, NUM_STATES)

    # --- eval / off-interval path (pure jnp, no kernel) — checked first, so the
    #     original padded parameter buffer is never reused after the aliased call.
    cur_eval, df_same, proj_none = adaptive_state_distance_forward(
        params, state_features, state_ids, is_training=False, update_counter=1)
    jax.block_until_ready(cur_eval)
    assert np.allclose(np.asarray(cur_eval)[:S, :S], cur_ref, atol=1e-4, rtol=1e-4)
    assert proj_none is None
    assert np.allclose(np.asarray(df_same)[:S, :S], init_df)

    # --- training step on the update interval (fused Pallas kernel path) ----
    cur, newdf_pad, proj = adaptive_state_distance_forward(
        params, state_features, state_ids, is_training=True, update_counter=0)
    jax.block_until_ready((cur, newdf_pad, proj))
    # In a real training loop the caller would now do:
    #   params["distance_factors"] = newdf_pad   # padded, alias-donated buffer

    assert np.allclose(np.asarray(cur)[:S, :S], cur_ref, atol=1e-4, rtol=1e-4)
    assert np.allclose(np.asarray(newdf_pad)[:S, :S], newdf_ref, atol=1e-4, rtol=1e-4)

    # projector reference with bf16-rounded operands (the kernel runs the MLP on
    # the MXU in bf16 with f32 accumulation)
    def _r(a):
        return np.asarray(jnp.asarray(a).astype(jnp.bfloat16).astype(jnp.float32))

    h_ref = np.maximum(_r(state_features) @ _r(w1_t) + np.asarray(b1), 0.0)
    proj_ref = _r(h_ref) @ _r(w2_t) + np.asarray(b2)
    assert np.allclose(np.asarray(proj), proj_ref, atol=5e-3, rtol=5e-3)

    print("KERNEL_OK")
</pallas_src>

<mosaic_0001>
module attributes {stable_mosaic.version = 11 : i64} {
  func.func @_fused_kernel(%arg0: memref<16x16xf32, #tpu.memory_space<vmem>>, %arg1: memref<1x8xi32, #tpu.memory_space<vmem>>, %arg2: memref<8x128xf32, #tpu.memory_space<vmem>>, %arg3: memref<128x64xbf16, #tpu.memory_space<vmem>>, %arg4: memref<64x32xbf16, #tpu.memory_space<vmem>>, %arg5: memref<1x128xf32, #tpu.memory_space<vmem>>, %arg6: memref<16x16xf32, #tpu.memory_space<vmem>>, %arg7: memref<16x128xf32, #tpu.memory_space<vmem>>) attributes {dimension_semantics = [], scalar_prefetch = 0 : i64, scratch_operands = 0 : i64, tpu.core_type = #tpu.core_type<tc>} {
    %c0 = arith.constant 0 : index
    %c0_0 = arith.constant 0 : index
    %0 = vector.load %arg0[%c0, %c0_0] : memref<16x16xf32, #tpu.memory_space<vmem>>, vector<16x16xf32>
    %1 = tpu.iota {dimensions = array<i32: 0>} : vector<16x16xi32>
    %2 = tpu.iota {dimensions = array<i32: 1>} : vector<16x16xi32>
    %3 = arith.cmpi eq, %1, %2 : vector<16x16xi32>
    %4 = arith.extui %3 : vector<16x16xi1> to vector<16x16xi32>
    %5 = arith.sitofp %4 : vector<16x16xi32> to vector<16x16xf32>
    %cst = arith.constant dense<0.000000e+00> : vector<16x16xf32>
    %6 = tpu.matmul %5, %0, %cst {dimension_numbers = #tpu.dot_dimension_numbers<[1], [1], [0], [0], [0, 0, 1, 0], [], []>} : vector<16x16xf32>, vector<16x16xf32>, vector<16x16xf32> -> vector<16x16xf32>
    %7 = arith.addf %0, %6 : vector<16x16xf32>
    %cst_1 = arith.constant 5.000000e-01 : f32
    %8 = vector.broadcast %cst_1 : f32 to vector<16x16xf32>
    %9 = arith.mulf %7, %8 : vector<16x16xf32>
    %cst_2 = arith.constant 1.000000e+00 : f32
    %10 = vector.broadcast %cst_2 : f32 to vector<16x16xf32>
    %11 = arith.select %3, %10, %9 : vector<16x16xi1>, vector<16x16xf32>
    %c0_3 = arith.constant 0 : index
    %c0_4 = arith.constant 0 : index
    %12 = vector.load %arg2[%c0_3, %c0_4] : memref<8x128xf32, #tpu.memory_space<vmem>>, vector<8x128xf32>
    %c0_5 = arith.constant 0 : index
    %c0_6 = arith.constant 0 : index
    %13 = vector.load %arg5[%c0_5, %c0_6] : memref<1x128xf32, #tpu.memory_space<vmem>>, vector<1x128xf32>
    %14 = vector.extract_strided_slice %13 {offsets = [0, 0], sizes = [1, 64], strides = [1, 1]} : vector<1x128xf32> to vector<1x64xf32>
    %15 = vector.extract_strided_slice %13 {offsets = [0, 64], sizes = [1, 32], strides = [1, 1]} : vector<1x128xf32> to vector<1x32xf32>
    %16 = arith.truncf %12 : vector<8x128xf32> to vector<8x128xbf16>
    %c0_7 = arith.constant 0 : index
    %c0_8 = arith.constant 0 : index
    %17 = vector.load %arg3[%c0_7, %c0_8] : memref<128x64xbf16, #tpu.memory_space<vmem>>, vector<128x64xbf16>
    %cst_9 = arith.constant dense<0.000000e+00> : vector<8x64xf32>
    %18 = tpu.matmul %16, %17, %cst_9 {dimension_numbers = #tpu.dot_dimension_numbers<[1], [0], [0], [1], [0, 0, 1, 1], [], []>} : vector<8x128xbf16>, vector<128x64xbf16>, vector<8x64xf32> -> vector<8x64xf32>
    %19 = vector.broadcast %14 : vector<1x64xf32> to vector<8x64xf32>
    %20 = arith.addf %18, %19 : vector<8x64xf32>
    %cst_10 = arith.constant 0.000000e+00 : f32
    %21 = vector.broadcast %cst_10 : f32 to vector<8x64xf32>
    %22 = arith.maximumf %20, %21 : vector<8x64xf32>
    %23 = arith.truncf %22 : vector<8x64xf32> to vector<8x64xbf16>
    %c0_11 = arith.constant 0 : index
    %c0_12 = arith.constant 0 : index
    %24 = vector.load %arg4[%c0_11, %c0_12] : memref<64x32xbf16, #tpu.memory_space<vmem>>, vector<64x32xbf16>
    %cst_13 = arith.constant dense<0.000000e+00> : vector<8x32xf32>
    %25 = tpu.matmul %23, %24, %cst_13 {dimension_numbers = #tpu.dot_dimension_numbers<[1], [0], [0], [1], [0, 0, 1, 1], [], []>} : vector<8x64xbf16>, vector<64x32xbf16>, vector<8x32xf32> -> vector<8x32xf32>
    %26 = vector.broadcast %15 : vector<1x32xf32> to vector<8x32xf32>
    %27 = arith.addf %25, %26 : vector<8x32xf32>
    %c0_14 = arith.constant 0 : index
    %c0_15 = arith.constant 0 : index
    %28 = vector.load %arg1[%c0_14, %c0_15] : memref<1x8xi32, #tpu.memory_space<vmem>>, vector<1x8xi32>
    %29 = tpu.iota {dimensions = array<i32: 0>} : vector<16x8xi32>
    %30 = vector.broadcast %28 : vector<1x8xi32> to vector<16x8xi32>
    %31 = arith.cmpi eq, %29, %30 : vector<16x8xi32>
    %32 = arith.extui %31 : vector<16x8xi1> to vector<16x8xi32>
    %33 = arith.sitofp %32 : vector<16x8xi32> to vector<16x8xf32>
    %cst_16 = arith.constant dense<0.000000e+00> : vector<16xf32>
    %34 = vector.multi_reduction <add>, %33, %cst_16 [1] : vector<16x8xf32> to vector<16xf32>
    %35 = vector.shape_cast %34 : vector<16xf32> to vector<16x1xf32>
    %cst_17 = arith.constant 1.000000e+00 : f32
    %36 = vector.broadcast %cst_17 : f32 to vector<1x8xf32>
    %cst_18 = arith.constant dense<0.000000e+00> : vector<1x16xf32>
    %37 = tpu.matmul %36, %33, %cst_18 {dimension_numbers = #tpu.dot_dimension_numbers<[1], [1], [0], [0], [0, 0, 1, 0], [], []>} : vector<1x8xf32>, vector<16x8xf32>, vector<1x16xf32> -> vector<1x16xf32>
    %cst_19 = arith.constant dense<0.000000e+00> : vector<16x128xf32>
    %38 = tpu.matmul %33, %12, %cst_19 {dimension_numbers = #tpu.dot_dimension_numbers<[1], [0], [0], [1], [0, 0, 1, 1], [], []>} : vector<16x8xf32>, vector<8x128xf32>, vector<16x128xf32> -> vector<16x128xf32>
    %cst_20 = arith.constant 1.000000e+00 : f32
    %39 = vector.broadcast %cst_20 : f32 to vector<16x1xf32>
    %40 = arith.maximumf %35, %39 : vector<16x1xf32>
    %cst_21 = arith.constant 1.000000e+00 : f32
    %41 = vector.broadcast %cst_21 : f32 to vector<16x1xf32>
    %42 = arith.divf %41, %40 : vector<16x1xf32>
    %43 = vector.broadcast %42 : vector<16x1xf32> to vector<16x128xf32>
    %44 = arith.mulf %38, %43 : vector<16x128xf32>
    %45 = arith.mulf %44, %44 : vector<16x128xf32>
    %cst_22 = arith.constant dense<0.000000e+00> : vector<16xf32>
    %46 = vector.multi_reduction <add>, %45, %cst_22 [1] : vector<16x128xf32> to vector<16xf32>
    %47 = vector.shape_cast %46 : vector<16xf32> to vector<16x1xf32>
    %cst_23 = arith.constant 1.000000e-24 : f32
    %48 = vector.broadcast %cst_23 : f32 to vector<16x1xf32>
    %49 = arith.maximumf %47, %48 : vector<16x1xf32>
    %50 = math.rsqrt %49 : vector<16x1xf32>
    %51 = vector.broadcast %50 : vector<16x1xf32> to vector<16x128xf32>
    %52 = arith.mulf %44, %51 : vector<16x128xf32>
    %cst_24 = arith.constant dense<0.000000e+00> : vector<16x16xf32>
    %53 = tpu.matmul %52, %52, %cst_24 {dimension_numbers = #tpu.dot_dimension_numbers<[1], [1], [0], [0], [0, 0, 1, 0], [], []>} : vector<16x128xf32>, vector<16x128xf32>, vector<16x16xf32> -> vector<16x16xf32>
    %cst_25 = arith.constant 2.000000e+00 : f32
    %54 = vector.broadcast %cst_25 : f32 to vector<16x16xf32>
    %55 = arith.subf %54, %53 : vector<16x16xf32>
    %56 = tpu.iota {dimensions = array<i32: 0>} : vector<16x1xi32>
    %57 = tpu.iota {dimensions = array<i32: 1>} : vector<1x16xi32>
    %cst_26 = arith.constant 0.000000e+00 : f32
    %58 = vector.broadcast %cst_26 : f32 to vector<16x1xf32>
    %59 = arith.cmpf ogt, %35, %58 : vector<16x1xf32>
    %c1_i32 = arith.constant 1 : i32
    %60 = vector.broadcast %c1_i32 : i32 to vector<16x1xi32>
    %61 = arith.cmpi sge, %56, %60 : vector<16x1xi32>
    %62 = arith.andi %59, %61 : vector<16x1xi1>
    %c10_i32 = arith.constant 10 : i32
    %63 = vector.broadcast %c10_i32 : i32 to vector<16x1xi32>
    %64 = arith.cmpi slt, %56, %63 : vector<16x1xi32>
    %65 = arith.andi %62, %64 : vector<16x1xi1>
    %cst_27 = arith.constant 0.000000e+00 : f32
    %66 = vector.broadcast %cst_27 : f32 to vector<1x16xf32>
    %67 = arith.cmpf ogt, %37, %66 : vector<1x16xf32>
    %c1_i32_28 = arith.constant 1 : i32
    %68 = vector.broadcast %c1_i32_28 : i32 to vector<1x16xi32>
    %69 = arith.cmpi sge, %57, %68 : vector<1x16xi32>
    %70 = arith.andi %67, %69 : vector<1x16xi1>
    %c10_i32_29 = arith.constant 10 : i32
    %71 = vector.broadcast %c10_i32_29 : i32 to vector<1x16xi32>
    %72 = arith.cmpi slt, %57, %71 : vector<1x16xi32>
    %73 = arith.andi %70, %72 : vector<1x16xi1>
    %74 = vector.broadcast %65 : vector<16x1xi1> to vector<16x16xi1>
    %75 = vector.broadcast %73 : vector<1x16xi1> to vector<16x16xi1>
    %76 = arith.andi %74, %75 : vector<16x16xi1>
    %cst_30 = arith.constant dense<true> : vector<16x16xi1>
    %77 = arith.xori %3, %cst_30 : vector<16x16xi1>
    %78 = arith.andi %76, %77 : vector<16x16xi1>
    %cst_31 = arith.constant 8.100000e-01 : f32
    %79 = vector.broadcast %cst_31 : f32 to vector<16x16xf32>
    %80 = arith.mulf %79, %0 : vector<16x16xf32>
    %cst_32 = arith.constant 1.900000e-01 : f32
    %81 = vector.broadcast %cst_32 : f32 to vector<16x16xf32>
    %82 = arith.mulf %81, %55 : vector<16x16xf32>
    %83 = arith.addf %80, %82 : vector<16x16xf32>
    %84 = arith.select %78, %83, %0 : vector<16x16xi1>, vector<16x16xf32>
    %c0_33 = arith.constant 0 : index
    %c0_34 = arith.constant 0 : index
    %85 = vector.load %arg6[%c0_33, %c0_34] : memref<16x16xf32, #tpu.memory_space<vmem>>, vector<16x16xf32>
    tpu.vector_store %arg6[%c0_33, %c0_34], %84 {strides = array<i32>} : memref<16x16xf32, #tpu.memory_space<vmem>>, vector<16x16xf32>,
    %cst_35 = arith.constant 0.000000e+00 : f32
    %86 = vector.broadcast %cst_35 : f32 to vector<16x128xf32>
    %c0_36 = arith.constant 0 : index
    %c0_37 = arith.constant 0 : index
    %87 = vector.load %arg7[%c0_36, %c0_37] : memref<16x128xf32, #tpu.memory_space<vmem>>, vector<16x128xf32>
    tpu.vector_store %arg7[%c0_36, %c0_37], %86 {strides = array<i32>} : memref<16x128xf32, #tpu.memory_space<vmem>>, vector<16x128xf32>,
    %c0_38 = arith.constant 0 : index
    %c0_39 = arith.constant 0 : index
    %88 = vector.load %arg7[%c0_38, %c0_39] : memref<16x128xf32, #tpu.memory_space<vmem>>, vector<16x16xf32>
    tpu.vector_store %arg7[%c0_38, %c0_39], %11 {strides = array<i32>} : memref<16x128xf32, #tpu.memory_space<vmem>>, vector<16x16xf32>,
    %c0_40 = arith.constant 0 : index
    %c16 = arith.constant 16 : index
    %89 = vector.load %arg7[%c0_40, %c16] : memref<16x128xf32, #tpu.memory_space<vmem>>, vector<8x32xf32>
    tpu.vector_store %arg7[%c0_40, %c16], %27 {strides = array<i32>} : memref<16x128xf32, #tpu.memory_space<vmem>>, vector<8x32xf32>,
    return
  }
}

</mosaic_0001>

<llo_original>
// kernel: tpu_custom_call.1
$region0: #{tpu_custom_call.1}
  #allocation0 [shape = 'u32[]', space=smem, size = 0x4, offset = 0x4, fixed_abs, tag = 'smem constant byte address 0x4 - core index']
  #allocation1 [shape = 'u32[144,128]{1,0:T(1,128)}', space=vmem, size = 0x12000, scoped, tag = 'internal scratch']
  %s0 = inlined_call_operand.hbm [shape: f32[16,16], index: 0, kind: input, shape index: {}, may-alias: {0,6}]
  %s1 = inlined_call_operand.vmem [shape: s32[1,8], index: 1, kind: input, shape index: {}]
  %s2 = inlined_call_operand.vmem [shape: f32[8,128], index: 2, kind: input, shape index: {}]
  %s3 = inlined_call_operand.vmem [shape: bf16[128,64], index: 3, kind: input, shape index: {}]
  %s4 = inlined_call_operand.vmem [shape: bf16[64,32], index: 4, kind: input, shape index: {}]
  %s5 = inlined_call_operand.vmem [shape: f32[1,128], index: 5, kind: input, shape index: {}]
  %s6 = inlined_call_operand.hbm [shape: f32[16,16], index: 6, kind: output, shape index: {0}, may-alias: {0,6}]
  %s7 = inlined_call_operand.hbm [shape: f32[16,128], index: 7, kind: output, shape index: {1}]
  %8 = xla_tuple %s6, %s7
  %s9 = sld [smem:[#allocation0]]
  $region46: #{tpu_custom_call.1} parent=0
    _
  %s11 = ssub.s32 1, %s9
  %s12 = scalar_select 0, %s11, %s9
  $region1: #{tpu_custom_call.1} parent=0
    #allocation2 [shape = 'u8[8192]{0}', space=vmem, size = 0x2000, scoped, tag = 'input window, operand 0, single buffered']
    #allocation3 [shape = 's32[1]{0}', space=sflag, size = 0x4, scoped, tag = 'scoped memory for tpu_custom_call.1']
    #allocation4 [shape = 's32[1]{0}', space=sflag, size = 0x4, scoped, tag = 'scoped memory for tpu_custom_call.1']
    #allocation5 [shape = 'u8[8192]{0}', space=vmem, size = 0x2000, scoped, tag = 'output window, operand 0, single buffered']
    #allocation6 [shape = 'u8[8192]{0}', space=vmem, size = 0x2000, scoped, tag = 'output window, operand 1, single buffered']
    #allocation7 [shape = 's32[1]{0}', space=sflag, size = 0x4, scoped, tag = 'scoped memory for tpu_custom_call.1']
    %13 = vsyncpa [#allocation3], 0
    %14 = vsyncpa [#allocation4], 0
    %15 = vsyncpa [#allocation7], 0
    // Predicated region
    $region2: #{tpu_custom_call.1} parent=1 // pred_check
      _
    $region3: #{tpu_custom_call.1} parent=1 // pred_check_branch
      %17 = sbr.rel (0) target = $region5
    $region4: #{tpu_custom_call.1} parent=1 // pred_region
      %s19 = ssub.s32 256, 256
      %20 = vsyncadd [#allocation3], %s19
      %s21 = sshll.u32 [#allocation2], 4
      %s22 = int_to_ptr.vmem [resolvable:$true] %s21
      %27 = dma.hbm_to_vmem [thread:$0]  %s0, 256, %s22, [#allocation3], 128, 128, 8
    $region5: #{tpu_custom_call.1} parent=1 // pred_fallthru
      _
    // Predicated region
    $region6: #{tpu_custom_call.1} parent=1 // pred_check
      _
    $region7: #{tpu_custom_call.1} parent=1 // pred_check_branch
      %29 = sbr.rel (0) target = $region9
    $region8: #{tpu_custom_call.1} parent=1 // pred_region
      _
    $region9: #{tpu_custom_call.1} parent=1 // pred_fallthru
      _
    // Predicated region
    $region10: #{tpu_custom_call.1} parent=1 // pred_check
      _
    $region11: #{tpu_custom_call.1} parent=1 // pred_check_branch
      %31 = sbr.rel (0) target = $region13
    $region12: #{tpu_custom_call.1} parent=1 // pred_region
      _
    $region13: #{tpu_custom_call.1} parent=1 // pred_fallthru
      _
    // Predicated region
    $region14: #{tpu_custom_call.1} parent=1 // pred_check
      _
    $region15: #{tpu_custom_call.1} parent=1 // pred_check_branch
      %33 = sbr.rel (0) target = $region17
    $region16: #{tpu_custom_call.1} parent=1 // pred_region
      _
    $region17: #{tpu_custom_call.1} parent=1 // pred_fallthru
      _
    // Predicated region
    $region18: #{tpu_custom_call.1} parent=1 // pred_check
      _
    $region19: #{tpu_custom_call.1} parent=1 // pred_check_branch
      %35 = sbr.rel (0) target = $region21
    $region20: #{tpu_custom_call.1} parent=1 // pred_region
      _
    $region21: #{tpu_custom_call.1} parent=1 // pred_fallthru
      _
    // Predicated region
    $region22: #{tpu_custom_call.1} parent=1 // pred_check
      _
    $region23: #{tpu_custom_call.1} parent=1 // pred_check_branch
      %37 = sbr.rel (0) target = $region25
    $region24: #{tpu_custom_call.1} parent=1 // pred_region
      _
    $region25: #{tpu_custom_call.1} parent=1 // pred_fallthru
      _
    // Predicated region
    $region26: #{tpu_custom_call.1} parent=1 // pred_check
      _
    $region27: #{tpu_custom_call.1} parent=1 // pred_check_branch
      %39 = sbr.rel (0) target = $region29
    $region28: #{tpu_custom_call.1} parent=1 // pred_region
      %40 = dma.done [#allocation3], 256
    $region29: #{tpu_custom_call.1} parent=1 // pred_fallthru
      _
    %v42 = vld [vmem:[#allocation2] sm:$0xff]
    %v43 = vld [vmem:[#allocation2 + $0x8] sm:$0xff]
    %v44 = vlaneseq
    %v45 = vshrl.u32 %v44, 7
    %v46 = vadd.s32 %v45, 8
    %v47 = vlaneseq
    %v48 = vand.u32 %v47, 127
    %vm49 = vcmp.eq.s32.totalorder %v45, %v48
    %vm50 = vcmp.eq.s32.totalorder %v46, %v48
    %v51 = vsel %vm49, 1, 0
    %v52 = vsel %vm50, 1, 0
    %v53 = vcvt.s32.f32 %v51
    %v54 = vcvt.s32.f32 %v52
    %vm55 = vcmask 130048
    %v57 = vsel %vm55, %v53, 0
    %v60 = vsel %vm55, %v54, 0
    %v63 = vsel %vm55, %v42, 0
    %v66 = vsel %vm55, %v43, 0
    %68 = vmatprep.subr.mxu0 0.0
    %69 = vmatpush1.xpose.msra.mxu0 0.0
    %70 = vmatprep.subr.mxu0 0.0
    %71 = vmatpush1.xpose.msra.mxu0 0.0
    %72 = vmatprep.subr.mxu0 0.0
    %73 = vmatpush1.xpose.msra.mxu0 0.0
    %74 = vmatprep.subr.mxu0 0.0
    %75 = vmatpush1.xpose.msra.mxu0 0.0
    %76 = vmatprep.subr.mxu0 0.0
    %77 = vmatpush1.xpose.msra.mxu0 0.0
    %78 = vmatprep.subr.mxu0 0.0
    %79 = vmatpush1.xpose.msra.mxu0 0.0
    %80 = vmatprep.subr.mxu0 0.0
    %81 = vmatpush1.xpose.msra.mxu0 0.0
    %82 = vmatprep.subr.mxu0 0.0
    %83 = vmatpush1.xpose.msra.mxu0 0.0
    %84 = vmatprep.subr.mxu0 0.0
    %85 = vmatpush1.xpose.msra.mxu0 0.0
    %86 = vmatprep.subr.mxu0 0.0
    %87 = vmatpush1.xpose.msra.mxu0 0.0
    %88 = vmatprep.subr.mxu0 0.0
    %89 = vmatpush1.xpose.msra.mxu0 0.0
    %90 = vmatprep.subr.mxu0 0.0
    %91 = vmatpush1.xpose.msra.mxu0 0.0
    %92 = vmatprep.subr.mxu0 0.0
    %93 = vmatpush1.xpose.msra.mxu0 0.0
    %94 = vmatprep.subr.mxu0 0.0
    %95 = vmatpush1.xpose.msra.mxu0 0.0
    %96 = vmatprep.subr.mxu0 0.0
    %97 = vmatpush1.xpose.msra.mxu0 %v66
    %98 = vmatprep.subr.mxu0 0.0
    %99 = vmatpush1.xpose.msra.mxu0 %v63
    %100 = vmatprep.subr.mxu0 0.0
    %101 = vmatpush2.xpose.msra.mxu0 0.0
    %102 = vmatprep.subr.mxu0 0.0
    %103 = vmatpush2.xpose.msra.mxu0 0.0
    %104 = vmatprep.subr.mxu0 0.0
    %105 = vmatpush2.xpose.msra.mxu0 0.0
    %106 = vmatprep.subr.mxu0 0.0
    %107 = vmatpush2.xpose.msra.mxu0 0.0
    %108 = vmatprep.subr.mxu0 0.0
    %109 = vmatpush2.xpose.msra.mxu0 0.0
    %110 = vmatprep.subr.mxu0 0.0
    %111 = vmatpush2.xpose.msra.mxu0 0.0
    %112 = vmatprep.subr.mxu0 0.0
    %113 = vmatpush2.xpose.msra.mxu0 0.0
    %114 = vmatprep.subr.mxu0 0.0
    %115 = vmatpush2.xpose.msra.mxu0 0.0
    %116 = vmatprep.subr.mxu0 0.0
    %117 = vmatpush2.xpose.msra.mxu0 0.0
    %118 = vmatprep.subr.mxu0 0.0
    %119 = vmatpush2.xpose.msra.mxu0 0.0
    %120 = vmatprep.subr.mxu0 0.0
    %121 = vmatpush2.xpose.msra.mxu0 0.0
    %122 = vmatprep.subr.mxu0 0.0
    %123 = vmatpush2.xpose.msra.mxu0 0.0
    %124 = vmatprep.subr.mxu0 0.0
    %125 = vmatpush2.xpose.msra.mxu0 0.0
    %126 = vmatprep.subr.mxu0 0.0
    %127 = vmatpush2.xpose.msra.mxu0 0.0
    %128 = vmatprep.subr.mxu0 0.0
    %129 = vmatpush2.xpose.msra.mxu0 0.0
    %130 = vmatprep.subr.mxu0 0.0
    %131 = vmatpush2.xpose.msra.mxu0 0.0
    %132 = vmatprep.mubr.f32.mxu0 0.0
    %133 = vmatmul.mubr.f32.gmra.mxu0 %v57
    %v134 = vpop.f32.mrf.mxu0
    %v135 = vadd.f32 0.0, %v134
    %v136 = vpop.f32.mrf.mxu0
    %137 = vmatprep.mubr.f32.mxu0 0.0
    %138 = vmatmul.mubr.f32.gmra.mxu0 %v60
    %v139 = vpop.f32.mrf.mxu0
    %v140 = vadd.f32 0.0, %v139
    %v141 = vpop.f32.mrf.mxu0
    %142 = vdwg.mxu0
    %v143 = vadd.f32 %v42, %v135
    %v144 = vadd.f32 %v43, %v140
    %v145 = vmul.f32 %v143, 0.5
    %v146 = vmul.f32 %v144, 0.5
    %v147 = vsel %vm49, 1.0, %v145
    %v148 = vsel %vm50, 1.0, %v146
    %v149 = vld [vmem:[%s2] sm:$0xff]
    %v150 = vld [vmem:[%s5] sm:$0x1]
    %v151 = vpack.c.bf16 %v149, %v149
    %v152 = vld [vmem:[%s3] sm:$0xf]
    %v153 = vld [vmem:[%s3 + $0x4] sm:$0xf]
    %v154 = vld [vmem:[%s3 + $0x8] sm:$0xf]
    %v155 = vld [vmem:[%s3 + $0xc] sm:$0xf]
    %v156 = vld [vmem:[%s3 + $0x10] sm:$0xf]
    %v157 = vld [vmem:[%s3 + $0x14] sm:$0xf]
    %v158 = vld [vmem:[%s3 + $0x18] sm:$0xf]
    %v159 = vld [vmem:[%s3 + $0x1c] sm:$0xf]
    %v160 = vld [vmem:[%s3 + $0x20] sm:$0xf]
    %v161 = vld [vmem:[%s3 + $0x24] sm:$0xf]
    %v162 = vld [vmem:[%s3 + $0x28] sm:$0xf]
    %v163 = vld [vmem:[%s3 + $0x2c] sm:$0xf]
    %v164 = vld [vmem:[%s3 + $0x30] sm:$0xf]
    %v165 = vld [vmem:[%s3 + $0x34] sm:$0xf]
    %v166 = vld [vmem:[%s3 + $0x38] sm:$0xf]
    %v167 = vld [vmem:[%s3 + $0x3c] sm:$0xf]
    %v169 = vlaneseq
    %v170 = vshrl.u32 %v169, 7
    %v171 = vsub.s32 0, %v170
    %v172 = vrot.slane %v150, %v171
    %v190 = vunpack.c.l.b16 %v152
    %v191 = vunpack.c.l.b16 %v153
    %v192 = vunpack.c.l.b16 %v154
    %v193 = vunpack.c.l.b16 %v155
    %v194 = vunpack.c.l.b16 %v156
    %v195 = vunpack.c.l.b16 %v157
    %v196 = vunpack.c.l.b16 %v158
    %v197 = vunpack.c.l.b16 %v159
    %v198 = vunpack.c.l.b16 %v160
    %v199 = vunpack.c.l.b16 %v161
    %v200 = vunpack.c.l.b16 %v162
    %v201 = vunpack.c.l.b16 %v163
    %v202 = vunpack.c.l.b16 %v164
    %v203 = vunpack.c.l.b16 %v165
    %v204 = vunpack.c.l.b16 %v166
    %v205 = vunpack.c.l.b16 %v167
    %v206 = vpack.c.b16 %v191, %v190
    %v207 = vpack.c.b16 %v193, %v192
    %v208 = vpack.c.b16 %v195, %v194
    %v209 = vpack.c.b16 %v197, %v196
    %v210 = vpack.c.b16 %v199, %v198
    %v211 = vpack.c.b16 %v201, %v200
    %v212 = vpack.c.b16 %v203, %v202
    %v213 = vpack.c.b16 %v205, %v204
    %222 = vmatprep.subr.bf16.mxu0 0
    %223 = vmatpush1.bf16.msra.mxu0 %v213
    %224 = vmatprep.subr.bf16.mxu0 0
    %225 = vmatpush1.bf16.msra.mxu0 %v212
    %226 = vmatprep.subr.bf16.mxu0 0
    %227 = vmatpush1.bf16.msra.mxu0 %v211
    %228 = vmatprep.subr.bf16.mxu0 0
    %229 = vmatpush1.bf16.msra.mxu0 %v210
    %230 = vmatprep.subr.bf16.mxu0 0
    %231 = vmatpush1.bf16.msra.mxu0 %v209
    %232 = vmatprep.subr.bf16.mxu0 0
    %233 = vmatpush1.bf16.msra.mxu0 %v208
    %234 = vmatprep.subr.bf16.mxu0 0
    %235 = vmatpush1.bf16.msra.mxu0 %v207
    %236 = vmatprep.subr.bf16.mxu0 0
    %237 = vmatpush1.bf16.msra.mxu0 %v206
    %238 = vmatprep.subr.bf16.mxu0 0
    %239 = vmatpush2.bf16.msra.mxu0 0
    %240 = vmatprep.subr.bf16.mxu0 0
    %241 = vmatpush2.bf16.msra.mxu0 0
    %242 = vmatprep.subr.bf16.mxu0 0
    %243 = vmatpush2.bf16.msra.mxu0 0
    %244 = vmatprep.subr.bf16.mxu0 0
    %245 = vmatpush2.bf16.msra.mxu0 0
    %246 = vmatprep.subr.bf16.mxu0 0
    %247 = vmatpush2.bf16.msra.mxu0 0
    %248 = vmatprep.subr.bf16.mxu0 0
    %249 = vmatpush2.bf16.msra.mxu0 0
    %250 = vmatprep.subr.bf16.mxu0 0
    %251 = vmatpush2.bf16.msra.mxu0 0
    %252 = vmatprep.subr.bf16.mxu0 0
    %253 = vmatpush2.bf16.msra.mxu0 0
    %254 = vmatprep.mubr.bf16.mxu0 0
    %255 = vmatmul.mubr.bf16.gmra.mxu0 %v151
    %v256 = vpop.f32.mrf.mxu0
    %v257 = vadd.f32 %v172, %v256
    %v258 = vpop.f32.mrf.mxu0
    %v259 = vpop.f32.mrf.mxu0
    %v260 = vpop.f32.mrf.mxu0
    %261 = vdwg.mxu0
    %v262 = vmax.f32 %v257, 0.0
    %v263 = vpack.c.bf16 %v262, %v262
    %v264 = vld [vmem:[%s4] sm:$0xf]
    %v265 = vld [vmem:[%s4 + $0x4] sm:$0xf]
    %v266 = vld [vmem:[%s4 + $0x8] sm:$0xf]
    %v267 = vld [vmem:[%s4 + $0xc] sm:$0xf]
    %v268 = vld [vmem:[%s4 + $0x10] sm:$0xf]
    %v269 = vld [vmem:[%s4 + $0x14] sm:$0xf]
    %v270 = vld [vmem:[%s4 + $0x18] sm:$0xf]
    %v271 = vld [vmem:[%s4 + $0x1c] sm:$0xf]
    %v280 = vunpack.c.l.b16 %v264
    %v281 = vunpack.c.l.b16 %v265
    %v282 = vunpack.c.l.b16 %v266
    %v283 = vunpack.c.l.b16 %v267
    %v284 = vunpack.c.l.b16 %v268
    %v285 = vunpack.c.l.b16 %v269
    %v286 = vunpack.c.l.b16 %v270
    %v287 = vunpack.c.l.b16 %v271
    %v288 = vpack.c.b16 %v281, %v280
    %v289 = vpack.c.b16 %v283, %v282
    %v290 = vpack.c.b16 %v285, %v284
    %v291 = vpack.c.b16 %v287, %v286
    %296 = vrot.lane.b32.xlu0 %v172, 64
    %v297 = vpop.permute.xlu0 %296
    %vm299 = vcmask 523264
    %v301 = vsel %vm299, %v263, 0
    %303 = vmatprep.subr.bf16.mxu0 0
    %304 = vmatpush1.bf16.msra.mxu0 0
    %305 = vmatprep.subr.bf16.mxu0 0
    %306 = vmatpush1.bf16.msra.mxu0 0
    %307 = vmatprep.subr.bf16.mxu0 0
    %308 = vmatpush1.bf16.msra.mxu0 0
    %309 = vmatprep.subr.bf16.mxu0 0
    %310 = vmatpush1.bf16.msra.mxu0 0
    %311 = vmatprep.subr.bf16.mxu0 0
    %312 = vmatpush1.bf16.msra.mxu0 %v291
    %313 = vmatprep.subr.bf16.mxu0 0
    %314 = vmatpush1.bf16.msra.mxu0 %v290
    %315 = vmatprep.subr.bf16.mxu0 0
    %316 = vmatpush1.bf16.msra.mxu0 %v289
    %317 = vmatprep.subr.bf16.mxu0 0
    %318 = vmatpush1.bf16.msra.mxu0 %v288
    %319 = vmatprep.subr.bf16.mxu0 0
    %320 = vmatpush2.bf16.msra.mxu0 0
    %321 = vmatprep.subr.bf16.mxu0 0
    %322 = vmatpush2.bf16.msra.mxu0 0
    %323 = vmatprep.subr.bf16.mxu0 0
    %324 = vmatpush2.bf16.msra.mxu0 0
    %325 = vmatprep.subr.bf16.mxu0 0
    %326 = vmatpush2.bf16.msra.mxu0 0
    %327 = vmatprep.subr.bf16.mxu0 0
    %328 = vmatpush2.bf16.msra.mxu0 0
    %329 = vmatprep.subr.bf16.mxu0 0
    %330 = vmatpush2.bf16.msra.mxu0 0
    %331 = vmatprep.subr.bf16.mxu0 0
    %332 = vmatpush2.bf16.msra.mxu0 0
    %333 = vmatprep.subr.bf16.mxu0 0
    %334 = vmatpush2.bf16.msra.mxu0 0
    %335 = vmatprep.mubr.bf16.mxu0 0
    %336 = vmatmul.mubr.bf16.gmra.mxu0 %v301
    %v337 = vpop.f32.mrf.mxu0
    %v338 = vadd.f32 %v297, %v337
    %v339 = vpop.f32.mrf.mxu0
    %v340 = vpop.f32.mrf.mxu0
    %v341 = vpop.f32.mrf.mxu0
    %342 = vdwg.mxu0
    %v343 = vld [vmem:[%s1] sm:$0x1]
    %v344 = vlaneseq
    %v345 = vshrl.u32 %v344, 7
    %v346 = vsub.s32 0, %v345
    %v347 = vrot.slane %v343, %v346
    %vm348 = vcmp.eq.s32.totalorder %v45, %v347
    %vm349 = vcmp.eq.s32.totalorder %v46, %v347
    %v350 = vsel %vm348, 1, 0
    %v351 = vsel %vm349, 1, 0
    %v352 = vcvt.s32.f32 %v350
    %v353 = vcvt.s32.f32 %v351
    %vm354 = vcmask 64512
    %v355 = vsel %vm354, %v352, 0.0
    %356 = vadd.xlane.f32.xlu0 %v355
    %v357 = vpop.xlane.xlu0 %356
    %v358 = vsel %vm354, %v353, 0.0
    %359 = vadd.xlane.f32.xlu0 %v358
    %v360 = vpop.xlane.xlu0 %359
    %v362 = vsel %vm354, 1.0, 0
    %v365 = vsel %vm354, %v352, 0
    %v368 = vsel %vm354, %v353, 0
    %370 = vmatprep.subr.mxu0 0.0
    %371 = vmatpush1.xpose.msra.mxu0 0.0
    %372 = vmatprep.subr.mxu0 0.0
    %373 = vmatpush1.xpose.msra.mxu0 0.0
    %374 = vmatprep.subr.mxu0 0.0
    %375 = vmatpush1.xpose.msra.mxu0 0.0
    %376 = vmatprep.subr.mxu0 0.0
    %377 = vmatpush1.xpose.msra.mxu0 0.0
    %378 = vmatprep.subr.mxu0 0.0
    %379 = vmatpush1.xpose.msra.mxu0 0.0
    %380 = vmatprep.subr.mxu0 0.0
    %381 = vmatpush1.xpose.msra.mxu0 0.0
    %382 = vmatprep.subr.mxu0 0.0
    %383 = vmatpush1.xpose.msra.mxu0 0.0
    %384 = vmatprep.subr.mxu0 0.0
    %385 = vmatpush1.xpose.msra.mxu0 0.0
    %386 = vmatprep.subr.mxu0 0.0
    %387 = vmatpush1.xpose.msra.mxu0 0.0
    %388 = vmatprep.subr.mxu0 0.0
    %389 = vmatpush1.xpose.msra.mxu0 0.0
    %390 = vmatprep.subr.mxu0 0.0
    %391 = vmatpush1.xpose.msra.mxu0 0.0
    %392 = vmatprep.subr.mxu0 0.0
    %393 = vmatpush1.xpose.msra.mxu0 0.0
    %394 = vmatprep.subr.mxu0 0.0
    %395 = vmatpush1.xpose.msra.mxu0 0.0
    %396 = vmatprep.subr.mxu0 0.0
    %397 = vmatpush1.xpose.msra.mxu0 0.0
    %398 = vmatprep.subr.mxu0 0.0
    %399 = vmatpush1.xpose.msra.mxu0 %v368
    %400 = vmatprep.subr.mxu0 0.0
    %401 = vmatpush1.xpose.msra.mxu0 %v365
    %402 = vmatprep.subr.mxu0 0.0
    %403 = vmatpush2.xpose.msra.mxu0 0.0
    %404 = vmatprep.subr.mxu0 0.0
    %405 = vmatpush2.xpose.msra.mxu0 0.0
    %406 = vmatprep.subr.mxu0 0.0
    %407 = vmatpush2.xpose.msra.mxu0 0.0
    %408 = vmatprep.subr.mxu0 0.0
    %409 = vmatpush2.xpose.msra.mxu0 0.0
    %410 = vmatprep.subr.mxu0 0.0
    %411 = vmatpush2.xpose.msra.mxu0 0.0
    %412 = vmatprep.subr.mxu0 0.0
    %413 = vmatpush2.xpose.msra.mxu0 0.0
    %414 = vmatprep.subr.mxu0 0.0
    %415 = vmatpush2.xpose.msra.mxu0 0.0
    %416 = vmatprep.subr.mxu0 0.0
    %417 = vmatpush2.xpose.msra.mxu0 0.0
    %418 = vmatprep.subr.mxu0 0.0
    %419 = vmatpush2.xpose.msra.mxu0 0.0
    %420 = vmatprep.subr.mxu0 0.0
    %421 = vmatpush2.xpose.msra.mxu0 0.0
    %422 = vmatprep.subr.mxu0 0.0
    %423 = vmatpush2.xpose.msra.mxu0 0.0
    %424 = vmatprep.subr.mxu0 0.0
    %425 = vmatpush2.xpose.msra.mxu0 0.0
    %426 = vmatprep.subr.mxu0 0.0
    %427 = vmatpush2.xpose.msra.mxu0 0.0
    %428 = vmatprep.subr.mxu0 0.0
    %429 = vmatpush2.xpose.msra.mxu0 0.0
    %430 = vmatprep.subr.mxu0 0.0
    %431 = vmatpush2.xpose.msra.mxu0 0.0
    %432 = vmatprep.subr.mxu0 0.0
    %433 = vmatpush2.xpose.msra.mxu0 0.0
    %434 = vmatprep.mubr.f32.mxu0 0.0
    %435 = vmatmul.mubr.f32.gmra.mxu0 %v362
    %v436 = vpop.f32.mrf.mxu0
    %v437 = vadd.f32 0.0, %v436
    %v438 = vpop.f32.mrf.mxu0
    %439 = vdwg.mxu0
    %440 = vmatprep.subr.mxu0 0.0
    %441 = vmatpush1.msra.mxu0 0.0
    %442 = vmatprep.subr.mxu0 0.0
    %443 = vmatpush1.msra.mxu0 0.0
    %444 = vmatprep.subr.mxu0 0.0
    %445 = vmatpush1.msra.mxu0 0.0
    %446 = vmatprep.subr.mxu0 0.0
    %447 = vmatpush1.msra.mxu0 0.0
    %448 = vmatprep.subr.mxu0 0.0
    %449 = vmatpush1.msra.mxu0 0.0
    %450 = vmatprep.subr.mxu0 0.0
    %451 = vmatpush1.msra.mxu0 0.0
    %452 = vmatprep.subr.mxu0 0.0
    %453 = vmatpush1.msra.mxu0 0.0
    %454 = vmatprep.subr.mxu0 0.0
    %455 = vmatpush1.msra.mxu0 0.0
    %456 = vmatprep.subr.mxu0 0.0
    %457 = vmatpush1.msra.mxu0 0.0
    %458 = vmatprep.subr.mxu0 0.0
    %459 = vmatpush1.msra.mxu0 0.0
    %460 = vmatprep.subr.mxu0 0.0
    %461 = vmatpush1.msra.mxu0 0.0
    %462 = vmatprep.subr.mxu0 0.0
    %463 = vmatpush1.msra.mxu0 0.0
    %464 = vmatprep.subr.mxu0 0.0
    %465 = vmatpush1.msra.mxu0 0.0
    %466 = vmatprep.subr.mxu0 0.0
    %467 = vmatpush1.msra.mxu0 0.0
    %468 = vmatprep.subr.mxu0 0.0
    %469 = vmatpush1.msra.mxu0 0.0
    %470 = vmatprep.subr.mxu0 0.0
    %471 = vmatpush1.msra.mxu0 %v149
    %472 = vmatprep.subr.mxu0 0.0
    %473 = vmatpush2.msra.mxu0 0.0
    %474 = vmatprep.subr.mxu0 0.0
    %475 = vmatpush2.msra.mxu0 0.0
    %476 = vmatprep.subr.mxu0 0.0
    %477 = vmatpush2.msra.mxu0 0.0
    %478 = vmatprep.subr.mxu0 0.0
    %479 = vmatpush2.msra.mxu0 0.0
    %480 = vmatprep.subr.mxu0 0.0
    %481 = vmatpush2.msra.mxu0 0.0
    %482 = vmatprep.subr.mxu0 0.0
    %483 = vmatpush2.msra.mxu0 0.0
    %484 = vmatprep.subr.mxu0 0.0
    %485 = vmatpush2.msra.mxu0 0.0
    %486 = vmatprep.subr.mxu0 0.0
    %487 = vmatpush2.msra.mxu0 0.0
    %488 = vmatprep.subr.mxu0 0.0
    %489 = vmatpush2.msra.mxu0 0.0
    %490 = vmatprep.subr.mxu0 0.0
    %491 = vmatpush2.msra.mxu0 0.0
    %492 = vmatprep.subr.mxu0 0.0
    %493 = vmatpush2.msra.mxu0 0.0
    %494 = vmatprep.subr.mxu0 0.0
    %495 = vmatpush2.msra.mxu0 0.0
    %496 = vmatprep.subr.mxu0 0.0
    %497 = vmatpush2.msra.mxu0 0.0
    %498 = vmatprep.subr.mxu0 0.0
    %499 = vmatpush2.msra.mxu0 0.0
    %500 = vmatprep.subr.mxu0 0.0
    %501 = vmatpush2.msra.mxu0 0.0
    %502 = vmatprep.subr.mxu0 0.0
    %503 = vmatpush2.msra.mxu0 0.0
    %504 = vmatprep.mubr.f32.mxu0 0.0
    %505 = vmatmul.mubr.f32.gmra.mxu0 %v365
    %v506 = vpop.f32.mrf.mxu0
    %v507 = vadd.f32 0.0, %v506
    %v508 = vpop.f32.mrf.mxu0
    %509 = vmatprep.mubr.f32.mxu0 0.0
    %510 = vmatmul.mubr.f32.gmra.mxu0 %v368
    %v511 = vpop.f32.mrf.mxu0
    %v512 = vadd.f32 0.0, %v511
    %v513 = vpop.f32.mrf.mxu0
    %514 = vdwg.mxu0
    %v515 = vmax.f32 %v357, 1.0
    %v516 = vmax.f32 %v360, 1.0
    %v517 = vrcp.pop %v515
    %v518 = vmul.f32 1.0, %v517
    %v519 = vrcp.pop %v516
    %v520 = vmul.f32 1.0, %v519
    %v521 = vmul.f32 %v507, %v518
    %v522 = vmul.f32 %v512, %v520
    %v523 = vmul.f32 %v521, %v521
    %v524 = vmul.f32 %v522, %v522
    %525 = vadd.xlane.f32.xlu0 %v523
    %v526 = vpop.xlane.xlu0 %525
    %527 = vadd.xlane.f32.xlu0 %v524
    %v528 = vpop.xlane.xlu0 %527
    %v529 = vmax.f32 %v526, 1e-24
    %v530 = vmax.f32 %v528, 1e-24
    %v531 = vrsqrt.pop %v529
    %v532 = vrsqrt.pop %v530
    %v533 = vmul.f32 %v521, %v531
    %v534 = vmul.f32 %v522, %v532
    %535 = vmatprep.subr.mxu0 0.0
    %536 = vmatpush1.xpose.msra.mxu0 0.0
    %537 = vmatprep.subr.mxu0 0.0
    %538 = vmatpush1.xpose.msra.mxu0 0.0
    %539 = vmatprep.subr.mxu0 0.0
    %540 = vmatpush1.xpose.msra.mxu0 0.0
    %541 = vmatprep.subr.mxu0 0.0
    %542 = vmatpush1.xpose.msra.mxu0 0.0
    %543 = vmatprep.subr.mxu0 0.0
    %544 = vmatpush1.xpose.msra.mxu0 0.0
    %545 = vmatprep.subr.mxu0 0.0
    %546 = vmatpush1.xpose.msra.mxu0 0.0
    %547 = vmatprep.subr.mxu0 0.0
    %548 = vmatpush1.xpose.msra.mxu0 0.0
    %549 = vmatprep.subr.mxu0 0.0
    %550 = vmatpush1.xpose.msra.mxu0 0.0
    %551 = vmatprep.subr.mxu0 0.0
    %552 = vmatpush1.xpose.msra.mxu0 0.0
    %553 = vmatprep.subr.mxu0 0.0
    %554 = vmatpush1.xpose.msra.mxu0 0.0
    %555 = vmatprep.subr.mxu0 0.0
    %556 = vmatpush1.xpose.msra.mxu0 0.0
    %557 = vmatprep.subr.mxu0 0.0
    %558 = vmatpush1.xpose.msra.mxu0 0.0
    %559 = vmatprep.subr.mxu0 0.0
    %560 = vmatpush1.xpose.msra.mxu0 0.0
    %561 = vmatprep.subr.mxu0 0.0
    %562 = vmatpush1.xpose.msra.mxu0 0.0
    %563 = vmatprep.subr.mxu0 0.0
    %564 = vmatpush1.xpose.msra.mxu0 %v534
    %565 = vmatprep.subr.mxu0 0.0
    %566 = vmatpush1.xpose.msra.mxu0 %v533
    %567 = vmatprep.subr.mxu0 0.0
    %568 = vmatpush2.xpose.msra.mxu0 0.0
    %569 = vmatprep.subr.mxu0 0.0
    %570 = vmatpush2.xpose.msra.mxu0 0.0
    %571 = vmatprep.subr.mxu0 0.0
    %572 = vmatpush2.xpose.msra.mxu0 0.0
    %573 = vmatprep.subr.mxu0 0.0
    %574 = vmatpush2.xpose.msra.mxu0 0.0
    %575 = vmatprep.subr.mxu0 0.0
    %576 = vmatpush2.xpose.msra.mxu0 0.0
    %577 = vmatprep.subr.mxu0 0.0
    %578 = vmatpush2.xpose.msra.mxu0 0.0
    %579 = vmatprep.subr.mxu0 0.0
    %580 = vmatpush2.xpose.msra.mxu0 0.0
    %581 = vmatprep.subr.mxu0 0.0
    %582 = vmatpush2.xpose.msra.mxu0 0.0
    %583 = vmatprep.subr.mxu0 0.0
    %584 = vmatpush2.xpose.msra.mxu0 0.0
    %585 = vmatprep.subr.mxu0 0.0
    %586 = vmatpush2.xpose.msra.mxu0 0.0
    %587 = vmatprep.subr.mxu0 0.0
    %588 = vmatpush2.xpose.msra.mxu0 0.0
    %589 = vmatprep.subr.mxu0 0.0
    %590 = vmatpush2.xpose.msra.mxu0 0.0
    %591 = vmatprep.subr.mxu0 0.0
    %592 = vmatpush2.xpose.msra.mxu0 0.0
    %593 = vmatprep.subr.mxu0 0.0
    %594 = vmatpush2.xpose.msra.mxu0 0.0
    %595 = vmatprep.subr.mxu0 0.0
    %596 = vmatpush2.xpose.msra.mxu0 0.0
    %597 = vmatprep.subr.mxu0 0.0
    %598 = vmatpush2.xpose.msra.mxu0 0.0
    %599 = vmatprep.mubr.f32.mxu0 0.0
    %600 = vmatmul.mubr.f32.gmra.mxu0 %v533
    %v601 = vpop.f32.mrf.mxu0
    %v602 = vadd.f32 0.0, %v601
    %v603 = vpop.f32.mrf.mxu0
    %604 = vmatprep.mubr.f32.mxu0 0.0
    %605 = vmatmul.mubr.f32.gmra.mxu0 %v534
    %v606 = vpop.f32.mrf.mxu0
    %v607 = vadd.f32 0.0, %v606
    %v608 = vpop.f32.mrf.mxu0
    %609 = vdwg.mxu0
    %v610 = vsub.f32 2.0, %v602
    %v611 = vsub.f32 2.0, %v607
    %vm612 = vcmp.gt.f32.partialorder %v357, 0.0
    %vm613 = vcmp.gt.f32.partialorder %v360, 0.0
    %vm614 = vcmp.ge.s32.totalorder %v45, 1
    %vm615 = vcmp.ge.s32.totalorder %v46, 1
    %vm616 = vmand %vm612, %vm614
    %vm617 = vmand %vm613, %vm615
    %vm618 = vcmp.lt.s32.totalorder %v45, 10
    %vm619 = vcmp.lt.s32.totalorder %v46, 10
    %vm620 = vmand %vm616, %vm618
    %vm621 = vmand %vm617, %vm619
    %vm622 = vcmp.gt.f32.partialorder %v437, 0.0
    %vm623 = vcmp.ge.s32.totalorder %v48, 1
    %vm624 = vmand %vm622, %vm623
    %vm625 = vcmp.lt.s32.totalorder %v48, 10
    %vm626 = vmand %vm624, %vm625
    %v627 = vsel %vm620, 1, 0
    %v628 = vsel %vm621, 1, 0
    %vm629 = vcmp.eq.s32.totalorder %v627, 1
    %vm630 = vcmp.eq.s32.totalorder %v628, 1
    %v631 = vsel %vm626, 1, 0
    %v632 = vlaneseq
    %v633 = vshrl.u32 %v632, 7
    %v634 = vsub.s32 0, %v633
    %v635 = vrot.slane %v631, %v634
    %vm636 = vcmp.eq.s32.totalorder %v635, 1
    %vm637 = vmand %vm629, %vm636
    %vm638 = vmand %vm630, %vm636
    %vm639 = vmxor %vm49, 1
    %vm640 = vmxor %vm50, 1
    %vm641 = vmand %vm637, %vm639
    %vm642 = vmand %vm638, %vm640
    %v643 = vmul.f32 %v42, 0.81
    %v644 = vmul.f32 %v43, 0.81
    %v645 = vmul.f32 %v610, 0.19
    %v646 = vmul.f32 %v611, 0.19
    %v647 = vadd.f32 %v643, %v645
    %v648 = vadd.f32 %v644, %v646
    %v649 = vsel %vm641, %v647, %v42
    %v650 = vsel %vm642, %v648, %v43
    %651 = vst.msk [vmem:[#allocation5] sm:$0xff] %vm55, %v649
    %652 = vst.msk [vmem:[#allocation5 + $0x8] sm:$0xff] %vm55, %v650
    %653 = vst [vmem:[#allocation6] sm:$0xff] 0.0
    %654 = vst [vmem:[#allocation6 + $0x8] sm:$0xff] 0.0
    %655 = vst.msk [vmem:[#allocation6] sm:$0xff] %vm55, %v147
    %656 = vst.msk [vmem:[#allocation6 + $0x8] sm:$0xff] %vm55, %v148
    %658 = vrot.lane.b32.xlu0 %v338, 16
    %v659 = vpop.permute.xlu0 %658
    %vm661 = vcmask 392320
    %662 = vst.msk [vmem:[#allocation6] sm:$0xff] %vm661, %v659
    // Predicated region
    $region30: #{tpu_custom_call.1} parent=1 // pred_check
      _
    $region31: #{tpu_custom_call.1} parent=1 // pred_check_branch
      %664 = sbr.rel (0) target = $region33
    $region32: #{tpu_custom_call.1} parent=1 // pred_region
      %s666 = ssub.s32 256, 256
      %667 = vsyncadd [#allocation4], %s666
      %s668 = sshll.u32 [#allocation5], 4
      %s669 = int_to_ptr.vmem [resolvable:$true] %s668
      %674 = dma.vmem_to_hbm [thread:$0]  %s669, 256, %s6, [#allocation4], 128, 128, 8
    $region33: #{tpu_custom_call.1} parent=1 // pred_fallthru
      _
    // Predicated region
    $region34: #{tpu_custom_call.1} parent=1 // pred_check
      _
    $region35: #{tpu_custom_call.1} parent=1 // pred_check_branch
      %676 = sbr.rel (0) target = $region37
    $region36: #{tpu_custom_call.1} parent=1 // pred_region
      %s678 = ssub.s32 256, 256
      %679 = vsyncadd [#allocation7], %s678
      %s680 = sshll.u32 [#allocation6], 4
      %s681 = int_to_ptr.vmem [resolvable:$true] %s680
      %686 = dma.vmem_to_hbm [thread:$0]  %s681, 256, %s7, [#allocation7], 128, 128, 8
    $region37: #{tpu_custom_call.1} parent=1 // pred_fallthru
      _
    // Predicated region
    $region38: #{tpu_custom_call.1} parent=1 // pred_check
      _
    $region39: #{tpu_custom_call.1} parent=1 // pred_check_branch
      %688 = sbr.rel (0) target = $region41
    $region40: #{tpu_custom_call.1} parent=1 // pred_region
      %689 = dma.done [#allocation4], 256
    $region41: #{tpu_custom_call.1} parent=1 // pred_fallthru
      _
    // Predicated region
    $region42: #{tpu_custom_call.1} parent=1 // pred_check
      _
    $region43: #{tpu_custom_call.1} parent=1 // pred_check_branch
      %691 = sbr.rel (0) target = $region45
    $region44: #{tpu_custom_call.1} parent=1 // pred_region
      %692 = dma.done [#allocation7], 256
    $region45: #{tpu_custom_call.1} parent=1 // pred_fallthru
      _
    %693 = vsyncpa [#allocation3], 1
    %694 = vsyncpa [#allocation4], 1
    %695 = vsyncpa [#allocation7], 1

</llo_original>
